<compile_context>
chip_gen: v7x
topology: tpu7x:2x2x1
jax: 0.10.0
libtpu: 0.0.40
codegen_flags: <defaults>
</compile_context>

<pallas_src>
import math
import functools

import jax
import jax.numpy as jnp
from jax import lax
from jax.experimental import pallas as pl
from jax.experimental.pallas import tpu as pltpu


_NEG_INF = -1e30  # finite mask value: avoids (-inf) - (-inf) = NaN hazards


def _layer_norm(h, w, b, eps=1e-5):
    """LayerNorm over the last dim, fp32 math (matches F.layer_norm, eps=1e-5)."""
    mu = jnp.mean(h, axis=-1, keepdims=True)
    var = jnp.mean((h - mu) ** 2, axis=-1, keepdims=True)
    return (h - mu) * lax.rsqrt(var + eps) * w + b


def _erf(x):
    """Abramowitz & Stegun 7.1.26 (max abs err 1.5e-7) — exact-GELU semantics
    at working precision, using only mul/add/div/exp/where."""
    p = 0.3275911
    a1, a2, a3, a4, a5 = (0.254829592, -0.284496736, 1.421413741,
                          -1.453152027, 1.061405429)
    ax = jnp.abs(x)
    t = 1.0 / (1.0 + p * ax)
    poly = ((((a5 * t + a4) * t + a3) * t + a2) * t + a1) * t
    y = 1.0 - poly * jnp.exp(-(ax * ax))
    return jnp.where(x >= 0, y, -y)


def _gelu_exact(x):
    return 0.5 * x * (1.0 + _erf(x * (1.0 / math.sqrt(2.0))))


# -------------------- kernel 1: ln1 + q/k/v projection -----------------------

def ln_qkv_kernel(x_ref, ln_w_ref, ln_b_ref,
                  wq_ref, bq_ref, wk_ref, bk_ref, wv_ref, bv_ref,
                  q_ref, k_ref, v_ref):
    x = x_ref[0]                                         # (TQ, C) f32
    h = _layer_norm(x, ln_w_ref[...], ln_b_ref[...])     # fp32 statistics
    hb = h.astype(jnp.bfloat16)                          # bf16 MXU operand

    def proj(w_ref, b_ref):
        return (jnp.dot(hb, w_ref[...], preferred_element_type=jnp.float32)
                + b_ref[...])                            # (TQ, C) f32

    q_ref[0] = proj(wq_ref, bq_ref).astype(q_ref.dtype)
    k_ref[0] = proj(wk_ref, bk_ref).astype(k_ref.dtype)
    v_ref[0] = proj(wv_ref, bv_ref).astype(v_ref.dtype)


# -------------- kernel 2: per-head flash attention (online softmax) ----------

def flash_attn_kernel(q_ref, k_ref, v_ref, o_ref, *, q_block, kv_block, head_dim):
    i = pl.program_id(2)                  # query-row block index
    tq, tk = q_block, kv_block
    scale = 1.0 / math.sqrt(head_dim)

    q = q_ref[0, 0]                       # (TQ, hd) bf16
    row = i * tq + lax.broadcasted_iota(jnp.int32, (tq, tk), 0)

    m0 = jnp.full((tq, 1), _NEG_INF, jnp.float32)
    l0 = jnp.zeros((tq, 1), jnp.float32)
    a0 = jnp.zeros((tq, head_dim), jnp.float32)

    def kv_step(j, carry):
        m_prev, l_prev, acc_prev = carry
        start = pl.multiple_of(j * tk, tk)
        kb = k_ref[0, 0, pl.ds(start, tk), :]            # (TK, hd) bf16
        vb = v_ref[0, 0, pl.ds(start, tk), :]            # (TK, hd) bf16
        s = jnp.einsum('qd,kd->qk', q, kb,
                       preferred_element_type=jnp.float32) * scale
        col = j * tk + lax.broadcasted_iota(jnp.int32, (tq, tk), 1)
        s = jnp.where(col <= row, s, _NEG_INF)           # causal, finite mask
        m_new = jnp.maximum(m_prev, jnp.max(s, axis=-1, keepdims=True))
        alpha = jnp.exp(m_prev - m_new)
        p = jnp.exp(s - m_new)
        l_new = alpha * l_prev + jnp.sum(p, axis=-1, keepdims=True)
        acc_new = alpha * acc_prev + jnp.dot(
            p.astype(jnp.bfloat16), vb, preferred_element_type=jnp.float32)
        return m_new, l_new, acc_new

    # Causal block skipping: only KV blocks j <= i contribute to this Q block.
    _, l_f, acc_f = lax.fori_loop(0, i + 1, kv_step, (m0, l0, a0))

    inv_l = pl.reciprocal(l_f, approx=True)              # EUP slot, ~free
    o_ref[0, 0] = (acc_f * inv_l).astype(o_ref.dtype)


# -------------- kernel 3: out-proj + residual + ln2 + MLP + residual ---------

def proj_mlp_kernel(x_ref, y_ref,
                    wap_ref, bap_ref, ln2w_ref, ln2b_ref,
                    wfc_ref, bfc_ref, wmp_ref, bmp_ref,
                    o_ref):
    x = x_ref[0]                                         # (TQ, C) f32 residual
    y = y_ref[0]                                         # (TQ, C) bf16 attn out

    attn = jnp.dot(y, wap_ref[...],
                   preferred_element_type=jnp.float32) + bap_ref[...]
    x1 = x + attn                                        # residual 1 (f32)

    h2 = _layer_norm(x1, ln2w_ref[...], ln2b_ref[...])
    f = jnp.dot(h2.astype(jnp.bfloat16), wfc_ref[...],
                preferred_element_type=jnp.float32) + bfc_ref[...]
    g = _gelu_exact(f)                                   # exact (erf) GELU, fp32
    m = jnp.dot(g.astype(jnp.bfloat16), wmp_ref[...],
                preferred_element_type=jnp.float32) + bmp_ref[...]
    o_ref[0] = (x1 + m).astype(o_ref.dtype)              # residual 2


# ----------------------------- wrapper ---------------------------------------

def block_forward(x, params, n_head, *, q_block=128):
    B, T, C = x.shape
    assert C % n_head == 0
    hd = C // n_head
    tq = q_block if (q_block <= T and T % q_block == 0) else T
    nq = T // tq
    bf16 = jnp.bfloat16

    # Split fused qkv weights into per-projection matrices (free at trace
    # time) and cast matmul weights to bf16.
    w_attn, b_attn = params["w_attn"], params["b_attn"]      # (C,3C), (1,3C)
    w_q = w_attn[:, 0:C].astype(bf16)
    w_k = w_attn[:, C:2 * C].astype(bf16)
    w_v = w_attn[:, 2 * C:3 * C].astype(bf16)
    b_q, b_k, b_v = b_attn[:, 0:C], b_attn[:, C:2 * C], b_attn[:, 2 * C:3 * C]

    ln1_w, ln1_b = params["ln1_w"], params["ln1_b"]
    ln2_w, ln2_b = params["ln2_w"], params["ln2_b"]
    w_ap, b_ap = params["w_aproj"].astype(bf16), params["b_aproj"]
    w_fc, b_fc = params["w_fc"].astype(bf16), params["b_fc"]
    w_mp, b_mp = params["w_mproj"].astype(bf16), params["b_mproj"]

    def const_spec(shape):
        n = len(shape)
        return pl.BlockSpec(shape, lambda *args, _n=n: (0,) * _n)

    # ---- kernel 1: ln1 + q/k/v projections ----------------------------------
    q, k, v = pl.pallas_call(
        ln_qkv_kernel,
        out_shape=tuple(jax.ShapeDtypeStruct((B, T, C), bf16) for _ in range(3)),
        grid_spec=pltpu.PrefetchScalarGridSpec(
            num_scalar_prefetch=0,
            grid=(B, nq),
            in_specs=[pl.BlockSpec((1, tq, C), lambda b, r: (b, r, 0))]
                     + [const_spec(w.shape) for w in
                        (ln1_w, ln1_b, w_q, b_q, w_k, b_k, w_v, b_v)],
            out_specs=[pl.BlockSpec((1, tq, C), lambda b, r: (b, r, 0))
                       for _ in range(3)],
        ),
        compiler_params=pltpu.CompilerParams(
            dimension_semantics=("parallel", "parallel")),
    )(x, ln1_w, ln1_b, w_q, b_q, w_k, b_k, w_v, b_v)

    # Head-major relayout done once by XLA (reliable, cheap) instead of inside
    # the kernels.
    def to_heads(t):
        return t.reshape(B, T, n_head, hd).transpose(0, 2, 1, 3)

    q_hm, k_hm, v_hm = to_heads(q), to_heads(k), to_heads(v)

    # ---- kernel 2: flash-style causal attention, grid over (B, H, Q-blocks) -
    y_hm = pl.pallas_call(
        functools.partial(flash_attn_kernel, q_block=tq, kv_block=tq,
                          head_dim=hd),
        out_shape=jax.ShapeDtypeStruct((B, n_head, T, hd), bf16),
        grid_spec=pltpu.PrefetchScalarGridSpec(
            num_scalar_prefetch=0,
            grid=(B, n_head, nq),
            in_specs=[
                pl.BlockSpec((1, 1, tq, hd), lambda b, h, i: (b, h, i, 0)),  # Q rows
                pl.BlockSpec((1, 1, T, hd), lambda b, h, i: (b, h, 0, 0)),   # K full
                pl.BlockSpec((1, 1, T, hd), lambda b, h, i: (b, h, 0, 0)),   # V full
            ],
            out_specs=pl.BlockSpec((1, 1, tq, hd), lambda b, h, i: (b, h, i, 0)),
        ),
        compiler_params=pltpu.CompilerParams(
            dimension_semantics=("parallel", "parallel", "parallel")),
    )(q_hm, k_hm, v_hm)

    y = y_hm.transpose(0, 2, 1, 3).reshape(B, T, C)      # back to (B, T, C)

    # ---- kernel 3: out-proj + residual + ln2 + MLP + residual ----------------
    out = pl.pallas_call(
        proj_mlp_kernel,
        out_shape=jax.ShapeDtypeStruct((B, T, C), x.dtype),
        grid_spec=pltpu.PrefetchScalarGridSpec(
            num_scalar_prefetch=0,
            grid=(B, nq),
            in_specs=[pl.BlockSpec((1, tq, C), lambda b, r: (b, r, 0)),   # x rows
                      pl.BlockSpec((1, tq, C), lambda b, r: (b, r, 0))]   # attn rows
                     + [const_spec(w.shape) for w in
                        (w_ap, b_ap, ln2_w, ln2_b, w_fc, b_fc, w_mp, b_mp)],
            out_specs=pl.BlockSpec((1, tq, C), lambda b, r: (b, r, 0)),
        ),
        compiler_params=pltpu.CompilerParams(
            dimension_semantics=("parallel", "parallel")),
    )(x, y, w_ap, b_ap, ln2_w, ln2_b, w_fc, b_fc, w_mp, b_mp)
    return out


# ------------------------- pure-JAX reference ---------------------------------

def block_reference(x, params, n_head):
    B, T, C = x.shape
    hd = C // n_head

    def ln(h, w, b):
        mu = jnp.mean(h, axis=-1, keepdims=True)
        var = jnp.mean((h - mu) ** 2, axis=-1, keepdims=True)
        return (h - mu) / jnp.sqrt(var + 1e-5) * w + b

    h = ln(x, params["ln1_w"], params["ln1_b"])
    qkv = h @ params["w_attn"] + params["b_attn"]
    q, k, v = jnp.split(qkv, 3, axis=-1)
    q = q.reshape(B, T, n_head, hd).transpose(0, 2, 1, 3)
    k = k.reshape(B, T, n_head, hd).transpose(0, 2, 1, 3)
    v = v.reshape(B, T, n_head, hd).transpose(0, 2, 1, 3)
    att = jnp.einsum("bhqd,bhkd->bhqk", q, k) / math.sqrt(hd)
    mask = jnp.tril(jnp.ones((T, T), dtype=bool))
    att = jnp.where(mask, att, -jnp.inf)
    att = jax.nn.softmax(att, axis=-1)
    y = jnp.einsum("bhqk,bhkd->bhqd", att, v)
    y = y.transpose(0, 2, 1, 3).reshape(B, T, C)
    y = y @ params["w_aproj"] + params["b_aproj"]
    x1 = x + y
    h2 = ln(x1, params["ln2_w"], params["ln2_b"])
    f = h2 @ params["w_fc"] + params["b_fc"]
    g = jax.nn.gelu(f, approximate=False)
    m = g @ params["w_mproj"] + params["b_mproj"]
    return x1 + m


# ----------------------------- main -------------------------------------------

if __name__ == "__main__":
    # Small config: batch=2, seq=8, n_embd=32, n_head=4, expansion_factor=4, bias=True
    # TODO(synk): dropout layers are identity (eval mode / p effectively 0).
    B, T, C, n_head, expansion = 2, 8, 32, 4, 4
    H = expansion * C

    ks = jax.random.split(jax.random.PRNGKey(0), 9)
    s = 0.02  # init scale

    params = {
        "ln1_w":   jnp.ones((1, C), jnp.float32),
        "ln1_b":   jnp.zeros((1, C), jnp.float32),
        # linear weights stored as (in, out) == torch weight.T
        "w_attn":  (s * jax.random.normal(ks[0], (C, 3 * C))).astype(jnp.float32),
        "b_attn":  (s * jax.random.normal(ks[1], (1, 3 * C))).astype(jnp.float32),
        "w_aproj": (s * jax.random.normal(ks[2], (C, C))).astype(jnp.float32),
        "b_aproj": (s * jax.random.normal(ks[3], (1, C))).astype(jnp.float32),
        "ln2_w":   jnp.ones((1, C), jnp.float32),
        "ln2_b":   jnp.zeros((1, C), jnp.float32),
        "w_fc":    (s * jax.random.normal(ks[4], (C, H))).astype(jnp.float32),
        "b_fc":    (s * jax.random.normal(ks[5], (1, H))).astype(jnp.float32),
        "w_mproj": (s * jax.random.normal(ks[6], (H, C))).astype(jnp.float32),
        "b_mproj": (s * jax.random.normal(ks[7], (1, C))).astype(jnp.float32),
    }

    x = jax.random.normal(ks[8], (B, T, C), jnp.float32)

    out = block_forward(x, params, n_head)
    out = jax.block_until_ready(out)

    ref = block_reference(x, params, n_head)
    assert out.shape == (B, T, C)
    # bf16 MXU operands (fp32 accumulation) -> compare with bf16-level tolerance.
    assert jnp.allclose(out, ref, rtol=1e-2, atol=1e-2), \
        f"max abs err {jnp.max(jnp.abs(out - ref))}"

    print("KERNEL_OK")
</pallas_src>

<mosaic_0001>
module attributes {stable_mosaic.version = 11 : i64} {
  func.func @ln_qkv_kernel(%arg0: i32, %arg1: i32, %arg2: memref<1x8x32xf32, #tpu.memory_space<vmem>>, %arg3: memref<1x32xf32, #tpu.memory_space<vmem>>, %arg4: memref<1x32xf32, #tpu.memory_space<vmem>>, %arg5: memref<32x32xbf16, #tpu.memory_space<vmem>>, %arg6: memref<1x32xf32, #tpu.memory_space<vmem>>, %arg7: memref<32x32xbf16, #tpu.memory_space<vmem>>, %arg8: memref<1x32xf32, #tpu.memory_space<vmem>>, %arg9: memref<32x32xbf16, #tpu.memory_space<vmem>>, %arg10: memref<1x32xf32, #tpu.memory_space<vmem>>, %arg11: memref<1x8x32xbf16, #tpu.memory_space<vmem>>, %arg12: memref<1x8x32xbf16, #tpu.memory_space<vmem>>, %arg13: memref<1x8x32xbf16, #tpu.memory_space<vmem>>) attributes {dimension_semantics = [#tpu.dimension_semantics<parallel>, #tpu.dimension_semantics<parallel>], iteration_bounds = array<i64: 2, 1>, scalar_prefetch = 0 : i64, scratch_operands = 0 : i64, tpu.core_type = #tpu.core_type<tc>, window_params = [{transform_indices = @transform_0, window_bounds = array<i64: 1, 8, 32>}, {pipeline_mode = #tpu.pipeline_mode<synchronous>, transform_indices = @transform_1, window_bounds = array<i64: 1, 32>}, {pipeline_mode = #tpu.pipeline_mode<synchronous>, transform_indices = @transform_2, window_bounds = array<i64: 1, 32>}, {pipeline_mode = #tpu.pipeline_mode<synchronous>, transform_indices = @transform_3, window_bounds = array<i64: 32, 32>}, {pipeline_mode = #tpu.pipeline_mode<synchronous>, transform_indices = @transform_4, window_bounds = array<i64: 1, 32>}, {pipeline_mode = #tpu.pipeline_mode<synchronous>, transform_indices = @transform_5, window_bounds = array<i64: 32, 32>}, {pipeline_mode = #tpu.pipeline_mode<synchronous>, transform_indices = @transform_6, window_bounds = array<i64: 1, 32>}, {pipeline_mode = #tpu.pipeline_mode<synchronous>, transform_indices = @transform_7, window_bounds = array<i64: 32, 32>}, {pipeline_mode = #tpu.pipeline_mode<synchronous>, transform_indices = @transform_8, window_bounds = array<i64: 1, 32>}, {transform_indices = @transform_9, window_bounds = array<i64: 1, 8, 32>}, {transform_indices = @transform_10, window_bounds = array<i64: 1, 8, 32>}, {transform_indices = @transform_11, window_bounds = array<i64: 1, 8, 32>}]} {
    %c0 = arith.constant 0 : index
    %c0_0 = arith.constant 0 : index
    %c0_1 = arith.constant 0 : index
    %0 = vector.load %arg2[%c0, %c0_0, %c0_1] : memref<1x8x32xf32, #tpu.memory_space<vmem>>, vector<1x8x32xf32>
    %1 = vector.shape_cast %0 : vector<1x8x32xf32> to vector<8x32xf32>
    %c0_2 = arith.constant 0 : index
    %c0_3 = arith.constant 0 : index
    %2 = vector.load %arg3[%c0_2, %c0_3] : memref<1x32xf32, #tpu.memory_space<vmem>>, vector<1x32xf32>
    %c0_4 = arith.constant 0 : index
    %c0_5 = arith.constant 0 : index
    %3 = vector.load %arg4[%c0_4, %c0_5] : memref<1x32xf32, #tpu.memory_space<vmem>>, vector<1x32xf32>
    %cst = arith.constant dense<0.000000e+00> : vector<8xf32>
    %4 = vector.multi_reduction <add>, %1, %cst [1] : vector<8x32xf32> to vector<8xf32>
    %5 = vector.shape_cast %4 : vector<8xf32> to vector<8x1xf32>
    %cst_6 = arith.constant 3.200000e+01 : f32
    %6 = vector.broadcast %cst_6 : f32 to vector<8x1xf32>
    %7 = arith.divf %5, %6 : vector<8x1xf32>
    %8 = vector.broadcast %7 : vector<8x1xf32> to vector<8x32xf32>
    %9 = arith.subf %1, %8 : vector<8x32xf32>
    %10 = arith.mulf %9, %9 : vector<8x32xf32>
    %cst_7 = arith.constant dense<0.000000e+00> : vector<8xf32>
    %11 = vector.multi_reduction <add>, %10, %cst_7 [1] : vector<8x32xf32> to vector<8xf32>
    %12 = vector.shape_cast %11 : vector<8xf32> to vector<8x1xf32>
    %cst_8 = arith.constant 3.200000e+01 : f32
    %13 = vector.broadcast %cst_8 : f32 to vector<8x1xf32>
    %14 = arith.divf %12, %13 : vector<8x1xf32>
    %15 = vector.broadcast %7 : vector<8x1xf32> to vector<8x32xf32>
    %16 = arith.subf %1, %15 : vector<8x32xf32>
    %cst_9 = arith.constant 9.99999974E-6 : f32
    %17 = vector.broadcast %cst_9 : f32 to vector<8x1xf32>
    %18 = arith.addf %14, %17 : vector<8x1xf32>
    %19 = math.rsqrt %18 : vector<8x1xf32>
    %20 = vector.broadcast %19 : vector<8x1xf32> to vector<8x32xf32>
    %21 = arith.mulf %16, %20 : vector<8x32xf32>
    %22 = vector.broadcast %2 : vector<1x32xf32> to vector<8x32xf32>
    %23 = arith.mulf %21, %22 : vector<8x32xf32>
    %24 = vector.broadcast %3 : vector<1x32xf32> to vector<8x32xf32>
    %25 = arith.addf %23, %24 : vector<8x32xf32>
    %26 = arith.truncf %25 : vector<8x32xf32> to vector<8x32xbf16>
    %c0_10 = arith.constant 0 : index
    %c0_11 = arith.constant 0 : index
    %27 = vector.load %arg5[%c0_10, %c0_11] : memref<32x32xbf16, #tpu.memory_space<vmem>>, vector<32x32xbf16>
    %cst_12 = arith.constant dense<0.000000e+00> : vector<8x32xf32>
    %28 = tpu.matmul %26, %27, %cst_12 {dimension_numbers = #tpu.dot_dimension_numbers<[1], [0], [0], [1], [0, 0, 1, 1], [], []>} : vector<8x32xbf16>, vector<32x32xbf16>, vector<8x32xf32> -> vector<8x32xf32>
    %c0_13 = arith.constant 0 : index
    %c0_14 = arith.constant 0 : index
    %29 = vector.load %arg6[%c0_13, %c0_14] : memref<1x32xf32, #tpu.memory_space<vmem>>, vector<1x32xf32>
    %30 = vector.broadcast %29 : vector<1x32xf32> to vector<8x32xf32>
    %31 = arith.addf %28, %30 : vector<8x32xf32>
    %32 = arith.truncf %31 : vector<8x32xf32> to vector<8x32xbf16>
    %c0_15 = arith.constant 0 : index
    %c0_16 = arith.constant 0 : index
    %c0_17 = arith.constant 0 : index
    %33 = vector.load %arg11[%c0_15, %c0_16, %c0_17] : memref<1x8x32xbf16, #tpu.memory_space<vmem>>, vector<1x8x32xbf16>
    %34 = vector.shape_cast %33 : vector<1x8x32xbf16> to vector<8x32xbf16>
    %35 = vector.shape_cast %32 : vector<8x32xbf16> to vector<1x8x32xbf16>
    tpu.vector_store %arg11[%c0_15, %c0_16, %c0_17], %35 {strides = array<i32>} : memref<1x8x32xbf16, #tpu.memory_space<vmem>>, vector<1x8x32xbf16>,
    %c0_18 = arith.constant 0 : index
    %c0_19 = arith.constant 0 : index
    %36 = vector.load %arg7[%c0_18, %c0_19] : memref<32x32xbf16, #tpu.memory_space<vmem>>, vector<32x32xbf16>
    %cst_20 = arith.constant dense<0.000000e+00> : vector<8x32xf32>
    %37 = tpu.matmul %26, %36, %cst_20 {dimension_numbers = #tpu.dot_dimension_numbers<[1], [0], [0], [1], [0, 0, 1, 1], [], []>} : vector<8x32xbf16>, vector<32x32xbf16>, vector<8x32xf32> -> vector<8x32xf32>
    %c0_21 = arith.constant 0 : index
    %c0_22 = arith.constant 0 : index
    %38 = vector.load %arg8[%c0_21, %c0_22] : memref<1x32xf32, #tpu.memory_space<vmem>>, vector<1x32xf32>
    %39 = vector.broadcast %38 : vector<1x32xf32> to vector<8x32xf32>
    %40 = arith.addf %37, %39 : vector<8x32xf32>
    %41 = arith.truncf %40 : vector<8x32xf32> to vector<8x32xbf16>
    %c0_23 = arith.constant 0 : index
    %c0_24 = arith.constant 0 : index
    %c0_25 = arith.constant 0 : index
    %42 = vector.load %arg12[%c0_23, %c0_24, %c0_25] : memref<1x8x32xbf16, #tpu.memory_space<vmem>>, vector<1x8x32xbf16>
    %43 = vector.shape_cast %42 : vector<1x8x32xbf16> to vector<8x32xbf16>
    %44 = vector.shape_cast %41 : vector<8x32xbf16> to vector<1x8x32xbf16>
    tpu.vector_store %arg12[%c0_23, %c0_24, %c0_25], %44 {strides = array<i32>} : memref<1x8x32xbf16, #tpu.memory_space<vmem>>, vector<1x8x32xbf16>,
    %c0_26 = arith.constant 0 : index
    %c0_27 = arith.constant 0 : index
    %45 = vector.load %arg9[%c0_26, %c0_27] : memref<32x32xbf16, #tpu.memory_space<vmem>>, vector<32x32xbf16>
    %cst_28 = arith.constant dense<0.000000e+00> : vector<8x32xf32>
    %46 = tpu.matmul %26, %45, %cst_28 {dimension_numbers = #tpu.dot_dimension_numbers<[1], [0], [0], [1], [0, 0, 1, 1], [], []>} : vector<8x32xbf16>, vector<32x32xbf16>, vector<8x32xf32> -> vector<8x32xf32>
    %c0_29 = arith.constant 0 : index
    %c0_30 = arith.constant 0 : index
    %47 = vector.load %arg10[%c0_29, %c0_30] : memref<1x32xf32, #tpu.memory_space<vmem>>, vector<1x32xf32>
    %48 = vector.broadcast %47 : vector<1x32xf32> to vector<8x32xf32>
    %49 = arith.addf %46, %48 : vector<8x32xf32>
    %50 = arith.truncf %49 : vector<8x32xf32> to vector<8x32xbf16>
    %c0_31 = arith.constant 0 : index
    %c0_32 = arith.constant 0 : index
    %c0_33 = arith.constant 0 : index
    %51 = vector.load %arg13[%c0_31, %c0_32, %c0_33] : memref<1x8x32xbf16, #tpu.memory_space<vmem>>, vector<1x8x32xbf16>
    %52 = vector.shape_cast %51 : vector<1x8x32xbf16> to vector<8x32xbf16>
    %53 = vector.shape_cast %50 : vector<8x32xbf16> to vector<1x8x32xbf16>
    tpu.vector_store %arg13[%c0_31, %c0_32, %c0_33], %53 {strides = array<i32>} : memref<1x8x32xbf16, #tpu.memory_space<vmem>>, vector<1x8x32xbf16>,
    return
  }
  func.func @transform_0(%arg0: i32, %arg1: i32) -> (i32, i32, i32) {
    %c0_i32 = arith.constant 0 : i32
    %c0_i32_0 = arith.constant 0 : i32
    return %arg0, %arg1, %c0_i32 : i32, i32, i32
  }
  func.func @transform_1(%arg0: i32, %arg1: i32) -> (i32, i32) {
    %c0_i32 = arith.constant 0 : i32
    %c0_i32_0 = arith.constant 0 : i32
    %c0_i32_1 = arith.constant 0 : i32
    return %c0_i32, %c0_i32_0 : i32, i32
  }
  func.func @transform_2(%arg0: i32, %arg1: i32) -> (i32, i32) {
    %c0_i32 = arith.constant 0 : i32
    %c0_i32_0 = arith.constant 0 : i32
    %c0_i32_1 = arith.constant 0 : i32
    return %c0_i32, %c0_i32_0 : i32, i32
  }
  func.func @transform_3(%arg0: i32, %arg1: i32) -> (i32, i32) {
    %c0_i32 = arith.constant 0 : i32
    %c0_i32_0 = arith.constant 0 : i32
    %c0_i32_1 = arith.constant 0 : i32
    return %c0_i32, %c0_i32_0 : i32, i32
  }
  func.func @transform_4(%arg0: i32, %arg1: i32) -> (i32, i32) {
    %c0_i32 = arith.constant 0 : i32
    %c0_i32_0 = arith.constant 0 : i32
    %c0_i32_1 = arith.constant 0 : i32
    return %c0_i32, %c0_i32_0 : i32, i32
  }
  func.func @transform_5(%arg0: i32, %arg1: i32) -> (i32, i32) {
    %c0_i32 = arith.constant 0 : i32
    %c0_i32_0 = arith.constant 0 : i32
    %c0_i32_1 = arith.constant 0 : i32
    return %c0_i32, %c0_i32_0 : i32, i32
  }
  func.func @transform_6(%arg0: i32, %arg1: i32) -> (i32, i32) {
    %c0_i32 = arith.constant 0 : i32
    %c0_i32_0 = arith.constant 0 : i32
    %c0_i32_1 = arith.constant 0 : i32
    return %c0_i32, %c0_i32_0 : i32, i32
  }
  func.func @transform_7(%arg0: i32, %arg1: i32) -> (i32, i32) {
    %c0_i32 = arith.constant 0 : i32
    %c0_i32_0 = arith.constant 0 : i32
    %c0_i32_1 = arith.constant 0 : i32
    return %c0_i32, %c0_i32_0 : i32, i32
  }
  func.func @transform_8(%arg0: i32, %arg1: i32) -> (i32, i32) {
    %c0_i32 = arith.constant 0 : i32
    %c0_i32_0 = arith.constant 0 : i32
    %c0_i32_1 = arith.constant 0 : i32
    return %c0_i32, %c0_i32_0 : i32, i32
  }
  func.func @transform_9(%arg0: i32, %arg1: i32) -> (i32, i32, i32) {
    %c0_i32 = arith.constant 0 : i32
    %c0_i32_0 = arith.constant 0 : i32
    return %arg0, %arg1, %c0_i32 : i32, i32, i32
  }
  func.func @transform_10(%arg0: i32, %arg1: i32) -> (i32, i32, i32) {
    %c0_i32 = arith.constant 0 : i32
    %c0_i32_0 = arith.constant 0 : i32
    return %arg0, %arg1, %c0_i32 : i32, i32, i32
  }
  func.func @transform_11(%arg0: i32, %arg1: i32) -> (i32, i32, i32) {
    %c0_i32 = arith.constant 0 : i32
    %c0_i32_0 = arith.constant 0 : i32
    return %arg0, %arg1, %c0_i32 : i32, i32, i32
  }
}

</mosaic_0001>

<llo_original>
// kernel: tpu_custom_call.1
$region0: #{tpu_custom_call.1}
  #allocation0 [shape = 'u32[]', space=smem, size = 0x4, offset = 0x4, fixed_abs, tag = 'smem constant byte address 0x4 - core index']
  #allocation1 [shape = 'u32[144,128]{1,0:T(1,128)}', space=vmem, size = 0x12000, scoped, tag = 'internal scratch']
  %s0 = inlined_call_operand.hbm [shape: f32[2,8,32], index: 0, kind: input, shape index: {}]
  %s1 = inlined_call_operand.vmem [shape: f32[1,32], index: 1, kind: input, shape index: {}]
  %s2 = inlined_call_operand.vmem [shape: f32[1,32], index: 2, kind: input, shape index: {}]
  %s3 = inlined_call_operand.hbm [shape: bf16[32,32], index: 3, kind: input, shape index: {}]
  %s4 = inlined_call_operand.hbm [shape: f32[1,32], index: 4, kind: input, shape index: {}]
  %s5 = inlined_call_operand.vmem [shape: bf16[32,32], index: 5, kind: input, shape index: {}]
  %s6 = inlined_call_operand.vmem [shape: f32[1,32], index: 6, kind: input, shape index: {}]
  %s7 = inlined_call_operand.hbm [shape: bf16[32,32], index: 7, kind: input, shape index: {}]
  %s8 = inlined_call_operand.vmem [shape: f32[1,32], index: 8, kind: input, shape index: {}]
  %s9 = inlined_call_operand.hbm [shape: bf16[2,8,32], index: 9, kind: output, shape index: {0}]
  %s10 = inlined_call_operand.hbm [shape: bf16[2,8,32], index: 10, kind: output, shape index: {1}]
  %s11 = inlined_call_operand.hbm [shape: bf16[2,8,32], index: 11, kind: output, shape index: {2}]
  %12 = xla_tuple %s9, %s10, %s11
  %s13 = sld [smem:[#allocation0]]
  $region101: #{tpu_custom_call.1} parent=0
    _
  %s15 = ssub.s32 1, %s13
  %s16 = scalar_select 0, %s15, %s13
  $region1: #{tpu_custom_call.1} parent=0
    #allocation2 [shape = 'u8[8192]{0}', space=vmem, size = 0x2000, scoped, tag = 'input window, operand 0']
    #allocation3 [shape = 's32[2]{0}', space=sflag, size = 0x8, scoped, tag = 'scoped memory for tpu_custom_call.1']
    #allocation4 [shape = 's32[2]{0}', space=sflag, size = 0x8, scoped, tag = 'scoped memory for tpu_custom_call.1']
    #allocation5 [shape = 'u8[8192]{0}', space=vmem, size = 0x2000, scoped, tag = 'input window, operand 3, single buffered']
    #allocation6 [shape = 's32[1]{0}', space=sflag, size = 0x4, scoped, tag = 'scoped memory for tpu_custom_call.1']
    #allocation7 [shape = 'u8[512]{0}', space=vmem, size = 0x400, scoped, tag = 'input window, operand 4, single buffered']
    #allocation8 [shape = 'u8[8192]{0}', space=vmem, size = 0x2000, scoped, tag = 'input window, operand 7, single buffered']
    #allocation9 [shape = 's32[1]{0}', space=sflag, size = 0x4, scoped, tag = 'scoped memory for tpu_custom_call.1']
    #allocation10 [shape = 'u8[4096]{0}', space=vmem, size = 0x1000, scoped, tag = 'output window, operand 0']
    #allocation11 [shape = 'u8[4096]{0}', space=vmem, size = 0x1000, scoped, tag = 'output window, operand 1']
    #allocation12 [shape = 's32[2]{0}', space=sflag, size = 0x8, scoped, tag = 'scoped memory for tpu_custom_call.1']
    #allocation13 [shape = 'u8[4096]{0}', space=vmem, size = 0x1000, scoped, tag = 'output window, operand 2']
    %17 = vsyncpa [#allocation3], 0
    %s18 = scalar_lea.sflag [#allocation3], 1
    %19 = vsyncpa %s18, 0
    %20 = vsyncpa [#allocation6], 0
    %21 = vsyncpa [#allocation9], 0
    %22 = vsyncpa [#allocation4], 0
    %s23 = scalar_lea.sflag [#allocation4], 1
    %24 = vsyncpa %s23, 0
    %25 = vsyncpa [#allocation12], 0
    %s26 = scalar_lea.sflag [#allocation12], 1
    %27 = vsyncpa %s26, 0
    loop: start=0, step=1, limit=4
    $region2: #{tpu_custom_call.1} parent=1 // loop_pre_header
      _
    $region3: #{tpu_custom_call.1} parent=1 // loop_header
      %s29 = sphi 0, %s33
      %p30 = scmp.ge.s32.totalorder %s29, 4
      %s36 = sphi 0, %s48
      %s37 = sphi 0, %s44
      %s38 = sphi 0, %s36
      %s39 = sphi 0, %s37
      %s40 = sphi 0, %s38
      %s41 = sphi 0, %s39
      %s53 = sphi 0, %s55
      %s56 = sphi 0, %s53
      %s57 = sphi 0, %s56
      %s73 = sphi 0, %s57
      %s77 = sphi 0, %s77
      %s79 = sphi 0, %s77
      %s80 = sphi 0, %s79
      %s94 = sphi 0, %s80
      %s98 = sphi 0, %s98
      %s100 = sphi 0, %s98
      %s101 = sphi 0, %s100
      %s115 = sphi 0, %s101
      %s119 = sphi 0, %s119
      %s121 = sphi 0, %s119
      %s122 = sphi 0, %s121
      %s136 = sphi 0, %s122
      %s140 = sphi 0, %s140
      %s142 = sphi 0, %s140
      %s143 = sphi 0, %s142
      %s157 = sphi 0, %s143
      %s161 = sphi 0, %s161
      %s163 = sphi 0, %s161
      %s164 = sphi 0, %s163
      %s178 = sphi 0, %s164
      %s182 = sphi 0, %s182
      %s184 = sphi 0, %s182
      %s185 = sphi 0, %s184
      %s199 = sphi 0, %s185
      %s203 = sphi 0, %s203
      %s205 = sphi 0, %s203
      %s206 = sphi 0, %s205
      %s220 = sphi 0, %s206
      %s224 = sphi 0, %s224
      %s226 = sphi 0, %s224
      %s227 = sphi 0, %s226
      %s241 = sphi 0, %s227
      %s249 = sphi 0, %s251
      %s252 = sphi 0, %s249
      %s253 = sphi 0, %s252
      %s269 = sphi 0, %s253
      %s277 = sphi 0, %s279
      %s280 = sphi 0, %s277
      %s281 = sphi 0, %s280
      %s297 = sphi 0, %s281
      %s305 = sphi 0, %s307
      %s308 = sphi 0, %s305
      %s309 = sphi 0, %s308
      %s325 = sphi 0, %s309
    $region4: #{tpu_custom_call.1} parent=1 // loop_header_branch
      %32 = sbr.rel (%p30) target = $region8
    $region5: #{tpu_custom_call.1} parent=1 // loop_body
      %s34 = ssub.s32 %s29, 1
      %s35 = ssub.s32 %s29, 2
      %s42 = sadd.s32 1, %s37
      %p43 = scmp.ge.s32.totalorder %s42, 1
      %s44 = scalar_select %p43, 0, %s42
      %s45 = sadd.s32 1, %s36
      %s46 = scalar_select %p43, %s45, %s36
      %p47 = scmp.ge.s32.totalorder %s46, 2
      %s48 = scalar_select %p47, 0, %s46
      %s49 = ssub.s32 %s36, %s48
      %s50 = ssub.s32 %s37, %s44
      %s51 = sor.u32 %s49, %s50
      %p52 = scmp.eq.s32.totalorder %s51, 0
      %s54 = sadd.s32 %s53, 1
      %s55 = scalar_select %p52, %s53, %s54
      %p58 = pneg %p52
      %p59 = scmp.eq.s32.totalorder %s29, 1
      %p60 = por %p58, %p59
      %p61 = scmp.ne.s32.totalorder %s53, %s56
      %p62 = scmp.eq.s32.totalorder %s29, 0
      %p63 = por %p61, %p62
      %p64 = scmp.ne.s32.totalorder %s53, %s56
      %p65 = scmp.eq.s32.totalorder %s34, 1
      %p66 = por %p64, %p65
      %p67 = scmp.ne.s32.totalorder %s56, %s57
      %p68 = scmp.eq.s32.totalorder %s34, 0
      %p69 = por %p67, %p68
      %p70 = scmp.ne.s32.totalorder %s56, %s57
      %p71 = scmp.eq.s32.totalorder %s35, 1
      %p72 = por %p70, %p71
      %p74 = scmp.ne.s32.totalorder %s57, %s73
      %p75 = scmp.eq.s32.totalorder %s35, 0
      %p76 = por %p74, %p75
      %s78 = sadd.s32 %s77, 1
      %p81 = scmp.eq.s32.totalorder %s29, 1
      %p82 = scmp.ne.s32.totalorder %s77, %s79
      %p83 = scmp.eq.s32.totalorder %s29, 0
      %p84 = por %p82, %p83
      %p85 = scmp.ne.s32.totalorder %s77, %s79
      %p86 = scmp.eq.s32.totalorder %s34, 1
      %p87 = por %p85, %p86
      %p88 = scmp.ne.s32.totalorder %s79, %s80
      %p89 = scmp.eq.s32.totalorder %s34, 0
      %p90 = por %p88, %p89
      %p91 = scmp.ne.s32.totalorder %s79, %s80
      %p92 = scmp.eq.s32.totalorder %s35, 1
      %p93 = por %p91, %p92
      %p95 = scmp.ne.s32.totalorder %s80, %s94
      %p96 = scmp.eq.s32.totalorder %s35, 0
      %p97 = por %p95, %p96
      %s99 = sadd.s32 %s98, 1
      %p102 = scmp.eq.s32.totalorder %s29, 1
      %p103 = scmp.ne.s32.totalorder %s98, %s100
      %p104 = scmp.eq.s32.totalorder %s29, 0
      %p105 = por %p103, %p104
      %p106 = scmp.ne.s32.totalorder %s98, %s100
      %p107 = scmp.eq.s32.totalorder %s34, 1
      %p108 = por %p106, %p107
      %p109 = scmp.ne.s32.totalorder %s100, %s101
      %p110 = scmp.eq.s32.totalorder %s34, 0
      %p111 = por %p109, %p110
      %p112 = scmp.ne.s32.totalorder %s100, %s101
      %p113 = scmp.eq.s32.totalorder %s35, 1
      %p114 = por %p112, %p113
      %p116 = scmp.ne.s32.totalorder %s101, %s115
      %p117 = scmp.eq.s32.totalorder %s35, 0
      %p118 = por %p116, %p117
      %s120 = sadd.s32 %s119, 1
      %p123 = scmp.eq.s32.totalorder %s29, 1
      %p124 = scmp.ne.s32.totalorder %s119, %s121
      %p125 = scmp.eq.s32.totalorder %s29, 0
      %p126 = por %p124, %p125
      %p127 = scmp.ne.s32.totalorder %s119, %s121
      %p128 = scmp.eq.s32.totalorder %s34, 1
      %p129 = por %p127, %p128
      %p130 = scmp.ne.s32.totalorder %s121, %s122
      %p131 = scmp.eq.s32.totalorder %s34, 0
      %p132 = por %p130, %p131
      %p133 = scmp.ne.s32.totalorder %s121, %s122
      %p134 = scmp.eq.s32.totalorder %s35, 1
      %p135 = por %p133, %p134
      %p137 = scmp.ne.s32.totalorder %s122, %s136
      %p138 = scmp.eq.s32.totalorder %s35, 0
      %p139 = por %p137, %p138
      %s141 = sadd.s32 %s140, 1
      %p144 = scmp.eq.s32.totalorder %s29, 1
      %p145 = scmp.ne.s32.totalorder %s140, %s142
      %p146 = scmp.eq.s32.totalorder %s29, 0
      %p147 = por %p145, %p146
      %p148 = scmp.ne.s32.totalorder %s140, %s142
      %p149 = scmp.eq.s32.totalorder %s34, 1
      %p150 = por %p148, %p149
      %p151 = scmp.ne.s32.totalorder %s142, %s143
      %p152 = scmp.eq.s32.totalorder %s34, 0
      %p153 = por %p151, %p152
      %p154 = scmp.ne.s32.totalorder %s142, %s143
      %p155 = scmp.eq.s32.totalorder %s35, 1
      %p156 = por %p154, %p155
      %p158 = scmp.ne.s32.totalorder %s143, %s157
      %p159 = scmp.eq.s32.totalorder %s35, 0
      %p160 = por %p158, %p159
      %s162 = sadd.s32 %s161, 1
      %p165 = scmp.eq.s32.totalorder %s29, 1
      %p166 = scmp.ne.s32.totalorder %s161, %s163
      %p167 = scmp.eq.s32.totalorder %s29, 0
      %p168 = por %p166, %p167
      %p169 = scmp.ne.s32.totalorder %s161, %s163
      %p170 = scmp.eq.s32.totalorder %s34, 1
      %p171 = por %p169, %p170
      %p172 = scmp.ne.s32.totalorder %s163, %s164
      %p173 = scmp.eq.s32.totalorder %s34, 0
      %p174 = por %p172, %p173
      %p175 = scmp.ne.s32.totalorder %s163, %s164
      %p176 = scmp.eq.s32.totalorder %s35, 1
      %p177 = por %p175, %p176
      %p179 = scmp.ne.s32.totalorder %s164, %s178
      %p180 = scmp.eq.s32.totalorder %s35, 0
      %p181 = por %p179, %p180
      %s183 = sadd.s32 %s182, 1
      %p186 = scmp.eq.s32.totalorder %s29, 1
      %p187 = scmp.ne.s32.totalorder %s182, %s184
      %p188 = scmp.eq.s32.totalorder %s29, 0
      %p189 = por %p187, %p188
      %p190 = scmp.ne.s32.totalorder %s182, %s184
      %p191 = scmp.eq.s32.totalorder %s34, 1
      %p192 = por %p190, %p191
      %p193 = scmp.ne.s32.totalorder %s184, %s185
      %p194 = scmp.eq.s32.totalorder %s34, 0
      %p195 = por %p193, %p194
      %p196 = scmp.ne.s32.totalorder %s184, %s185
      %p197 = scmp.eq.s32.totalorder %s35, 1
      %p198 = por %p196, %p197
      %p200 = scmp.ne.s32.totalorder %s185, %s199
      %p201 = scmp.eq.s32.totalorder %s35, 0
      %p202 = por %p200, %p201
      %s204 = sadd.s32 %s203, 1
      %p207 = scmp.eq.s32.totalorder %s29, 1
      %p208 = scmp.ne.s32.totalorder %s203, %s205
      %p209 = scmp.eq.s32.totalorder %s29, 0
      %p210 = por %p208, %p209
      %p211 = scmp.ne.s32.totalorder %s203, %s205
      %p212 = scmp.eq.s32.totalorder %s34, 1
      %p213 = por %p211, %p212
      %p214 = scmp.ne.s32.totalorder %s205, %s206
      %p215 = scmp.eq.s32.totalorder %s34, 0
      %p216 = por %p214, %p215
      %p217 = scmp.ne.s32.totalorder %s205, %s206
      %p218 = scmp.eq.s32.totalorder %s35, 1
      %p219 = por %p217, %p218
      %p221 = scmp.ne.s32.totalorder %s206, %s220
      %p222 = scmp.eq.s32.totalorder %s35, 0
      %p223 = por %p221, %p222
      %s225 = sadd.s32 %s224, 1
      %p228 = scmp.eq.s32.totalorder %s29, 1
      %p229 = scmp.ne.s32.totalorder %s224, %s226
      %p230 = scmp.eq.s32.totalorder %s29, 0
      %p231 = por %p229, %p230
      %p232 = scmp.ne.s32.totalorder %s224, %s226
      %p233 = scmp.eq.s32.totalorder %s34, 1
      %p234 = por %p232, %p233
      %p235 = scmp.ne.s32.totalorder %s226, %s227
      %p236 = scmp.eq.s32.totalorder %s34, 0
      %p237 = por %p235, %p236
      %p238 = scmp.ne.s32.totalorder %s226, %s227
      %p239 = scmp.eq.s32.totalorder %s35, 1
      %p240 = por %p238, %p239
      %p242 = scmp.ne.s32.totalorder %s227, %s241
      %p243 = scmp.eq.s32.totalorder %s35, 0
      %p244 = por %p242, %p243
      %s245 = ssub.s32 %s36, %s48
      %s246 = ssub.s32 %s37, %s44
      %s247 = sor.u32 %s245, %s246
      %p248 = scmp.eq.s32.totalorder %s247, 0
      %s250 = sadd.s32 %s249, 1
      %s251 = scalar_select %p248, %s249, %s250
      %p254 = pneg %p248
      %p255 = scmp.eq.s32.totalorder %s29, 1
      %p256 = por %p254, %p255
      %p257 = scmp.ne.s32.totalorder %s249, %s252
      %p258 = scmp.eq.s32.totalorder %s29, 0
      %p259 = por %p257, %p258
      %p260 = scmp.ne.s32.totalorder %s249, %s252
      %p261 = scmp.eq.s32.totalorder %s34, 1
      %p262 = por %p260, %p261
      %p263 = scmp.ne.s32.totalorder %s252, %s253
      %p264 = scmp.eq.s32.totalorder %s34, 0
      %p265 = por %p263, %p264
      %p266 = scmp.ne.s32.totalorder %s252, %s253
      %p267 = scmp.eq.s32.totalorder %s35, 1
      %p268 = por %p266, %p267
      %p270 = scmp.ne.s32.totalorder %s253, %s269
      %p271 = scmp.eq.s32.totalorder %s35, 0
      %p272 = por %p270, %p271
      %s273 = ssub.s32 %s36, %s48
      %s274 = ssub.s32 %s37, %s44
      %s275 = sor.u32 %s273, %s274
      %p276 = scmp.eq.s32.totalorder %s275, 0
      %s278 = sadd.s32 %s277, 1
      %s279 = scalar_select %p276, %s277, %s278
      %p282 = pneg %p276
      %p283 = scmp.eq.s32.totalorder %s29, 1
      %p284 = por %p282, %p283
      %p285 = scmp.ne.s32.totalorder %s277, %s280
      %p286 = scmp.eq.s32.totalorder %s29, 0
      %p287 = por %p285, %p286
      %p288 = scmp.ne.s32.totalorder %s277, %s280
      %p289 = scmp.eq.s32.totalorder %s34, 1
      %p290 = por %p288, %p289
      %p291 = scmp.ne.s32.totalorder %s280, %s281
      %p292 = scmp.eq.s32.totalorder %s34, 0
      %p293 = por %p291, %p292
      %p294 = scmp.ne.s32.totalorder %s280, %s281
      %p295 = scmp.eq.s32.totalorder %s35, 1
      %p296 = por %p294, %p295
      %p298 = scmp.ne.s32.totalorder %s281, %s297
      %p299 = scmp.eq.s32.totalorder %s35, 0
      %p300 = por %p298, %p299
      %s301 = ssub.s32 %s36, %s48
      %s302 = ssub.s32 %s37, %s44
      %s303 = sor.u32 %s301, %s302
      %p304 = scmp.eq.s32.totalorder %s303, 0
      %s306 = sadd.s32 %s305, 1
      %s307 = scalar_select %p304, %s305, %s306
      %p310 = pneg %p304
      %p311 = scmp.eq.s32.totalorder %s29, 1
      %p312 = por %p310, %p311
      %p313 = scmp.ne.s32.totalorder %s305, %s308
      %p314 = scmp.eq.s32.totalorder %s29, 0
      %p315 = por %p313, %p314
      %p316 = scmp.ne.s32.totalorder %s305, %s308
      %p317 = scmp.eq.s32.totalorder %s34, 1
      %p318 = por %p316, %p317
      %p319 = scmp.ne.s32.totalorder %s308, %s309
      %p320 = scmp.eq.s32.totalorder %s34, 0
      %p321 = por %p319, %p320
      %p322 = scmp.ne.s32.totalorder %s308, %s309
      %p323 = scmp.eq.s32.totalorder %s35, 1
      %p324 = por %p322, %p323
      %p326 = scmp.ne.s32.totalorder %s309, %s325
      %p327 = scmp.eq.s32.totalorder %s35, 0
      %p328 = por %p326, %p327
      %p329 = scmp.le.s32.totalorder 1, %s29
      %p330 = scmp.lt.s32.totalorder %s29, 3
      %p331 = pnand %p329, %p330
      %p332 = pneg %p331
      // Predicated region
      $region9: #{tpu_custom_call.1} parent=5 // pred_check
        _
      $region10: #{tpu_custom_call.1} parent=5 // pred_check_branch
        %334 = sbr.rel (%p331) target = $region12
      $region11: #{tpu_custom_call.1} parent=5 // pred_region
        %s335 = ssub.s32 %s29, 1
        // Predicated region
        $region13: #{tpu_custom_call.1} parent=11 // pred_check
          %p336 = pneg %p90
        $region14: #{tpu_custom_call.1} parent=11 // pred_check_branch
          %338 = sbr.rel (%p336) target = $region16
        $region15: #{tpu_custom_call.1} parent=11 // pred_region
          _
        $region16: #{tpu_custom_call.1} parent=11 // pred_fallthru
          _
        // Predicated region
        $region17: #{tpu_custom_call.1} parent=11 // pred_check
          %p339 = pneg %p111
        $region18: #{tpu_custom_call.1} parent=11 // pred_check_branch
          %341 = sbr.rel (%p339) target = $region20
        $region19: #{tpu_custom_call.1} parent=11 // pred_region
          _
        $region20: #{tpu_custom_call.1} parent=11 // pred_fallthru
          _
        // Predicated region
        $region21: #{tpu_custom_call.1} parent=11 // pred_check
          %p342 = pneg %p132
        $region22: #{tpu_custom_call.1} parent=11 // pred_check_branch
          %344 = sbr.rel (%p342) target = $region24
        $region23: #{tpu_custom_call.1} parent=11 // pred_region
          %s346 = ssub.s32 256, 256
          %347 = vsyncadd [#allocation6], %s346
          %s348 = sshll.u32 [#allocation5], 4
          %s349 = int_to_ptr.vmem [resolvable:$true] %s348
          %354 = dma.hbm_to_vmem [thread:$0]  %s3, 256, %s349, [#allocation6], 64, 64, 4
        $region24: #{tpu_custom_call.1} parent=11 // pred_fallthru
          _
        // Predicated region
        $region25: #{tpu_custom_call.1} parent=11 // pred_check
          %p355 = pneg %p153
        $region26: #{tpu_custom_call.1} parent=11 // pred_check_branch
          %357 = sbr.rel (%p355) target = $region28
        $region27: #{tpu_custom_call.1} parent=11 // pred_region
          %s359 = ssub.s32 16, 16
          %360 = vsyncadd [#allocation6], %s359
          %s362 = sshll.u32 [#allocation7], 4
          %s363 = int_to_ptr.vmem [resolvable:$true] %s362
          %365 = dma.hbm_to_vmem [thread:$0]  %s4, 16, %s363, [#allocation6]
        $region28: #{tpu_custom_call.1} parent=11 // pred_fallthru
          _
        // Predicated region
        $region29: #{tpu_custom_call.1} parent=11 // pred_check
          %p366 = pneg %p174
        $region30: #{tpu_custom_call.1} parent=11 // pred_check_branch
          %368 = sbr.rel (%p366) target = $region32
        $region31: #{tpu_custom_call.1} parent=11 // pred_region
          _
        $region32: #{tpu_custom_call.1} parent=11 // pred_fallthru
          _
        // Predicated region
        $region33: #{tpu_custom_call.1} parent=11 // pred_check
          %p369 = pneg %p195
        $region34: #{tpu_custom_call.1} parent=11 // pred_check_branch
          %371 = sbr.rel (%p369) target = $region36
        $region35: #{tpu_custom_call.1} parent=11 // pred_region
          _
        $region36: #{tpu_custom_call.1} parent=11 // pred_fallthru
          _
        // Predicated region
        $region37: #{tpu_custom_call.1} parent=11 // pred_check
          %p372 = pneg %p216
        $region38: #{tpu_custom_call.1} parent=11 // pred_check_branch
          %374 = sbr.rel (%p372) target = $region40
        $region39: #{tpu_custom_call.1} parent=11 // pred_region
          %s376 = ssub.s32 256, 256
          %377 = vsyncadd [#allocation9], %s376
          %s378 = sshll.u32 [#allocation8], 4
          %s379 = int_to_ptr.vmem [resolvable:$true] %s378
          %384 = dma.hbm_to_vmem [thread:$0]  %s7, 256, %s379, [#allocation9], 64, 64, 4
        $region40: #{tpu_custom_call.1} parent=11 // pred_fallthru
          _
        // Predicated region
        $region41: #{tpu_custom_call.1} parent=11 // pred_check
          %p385 = pneg %p237
        $region42: #{tpu_custom_call.1} parent=11 // pred_check_branch
          %387 = sbr.rel (%p385) target = $region44
        $region43: #{tpu_custom_call.1} parent=11 // pred_region
          _
        $region44: #{tpu_custom_call.1} parent=11 // pred_fallthru
          _
      $region12: #{tpu_custom_call.1} parent=5 // pred_fallthru
        _
      %p388 = scmp.lt.s32.totalorder %s29, 2
      // Predicated region
      $region45: #{tpu_custom_call.1} parent=5 // pred_check
        %p389 = pneg %p388
      $region46: #{tpu_custom_call.1} parent=5 // pred_check_branch
        %391 = sbr.rel (%p389) target = $region48
      $region47: #{tpu_custom_call.1} parent=5 // pred_region
        // Predicated region
        $region49: #{tpu_custom_call.1} parent=47 // pred_check
          %p392 = pneg %p63
        $region50: #{tpu_custom_call.1} parent=47 // pred_check_branch
          %394 = sbr.rel (%p392) target = $region52
        $region51: #{tpu_custom_call.1} parent=47 // pred_region
          %s395 = sand.u32 %s53, 1
          %s396 = scalar_lea.sflag [#allocation3], %s395
          %s397 = sand.u32 %s53, 1
          %s398 = smul.addr %s397, 8
          %s399 = scalar_lea.vmem [#allocation2], %s398
          %s401 = ssub.s32 128, 128
          %402 = vsyncadd %s396, %s401
          %s403 = sadd.s32 %s37, %s36
          %s404 = smul.addr %s403, 128
          %s405 = scalar_lea.hbm %s0, %s404
          %s407 = sshll.u32 %s399, 4
          %s408 = int_to_ptr.vmem [resolvable:$true] %s407
          %410 = dma.hbm_to_vmem [thread:$0]  %s405, 128, %s408, %s396
        $region52: #{tpu_custom_call.1} parent=47 // pred_fallthru
          _
      $region48: #{tpu_custom_call.1} parent=5 // pred_fallthru
        _
      %p411 = scmp.le.s32.totalorder 1, %s29
      %p412 = scmp.lt.s32.totalorder %s29, 3
      %p413 = pnand %p411, %p412
      %p414 = pneg %p413
      // Predicated region
      $region53: #{tpu_custom_call.1} parent=5 // pred_check
        _
      $region54: #{tpu_custom_call.1} parent=5 // pred_check_branch
        %416 = sbr.rel (%p413) target = $region56
      $region55: #{tpu_custom_call.1} parent=5 // pred_region
        %s417 = ssub.s32 %s29, 1
        %s418 = sand.u32 %s56, 1
        %s419 = scalar_lea.sflag [#allocation3], %s418
        %s420 = sand.u32 %s56, 1
        %s421 = smul.addr %s420, 8
        %s422 = scalar_lea.vmem [#allocation2], %s421
        // Predicated region
        $region57: #{tpu_custom_call.1} parent=55 // pred_check
          %p423 = pneg %p69
        $region58: #{tpu_custom_call.1} parent=55 // pred_check_branch
          %425 = sbr.rel (%p423) target = $region60
        $region59: #{tpu_custom_call.1} parent=55 // pred_region
          %426 = dma.done %s419, 128
        $region60: #{tpu_custom_call.1} parent=55 // pred_fallthru
          _
        // Predicated region
        $region61: #{tpu_custom_call.1} parent=55 // pred_check
          %p427 = pneg %p132
        $region62: #{tpu_custom_call.1} parent=55 // pred_check_branch
          %429 = sbr.rel (%p427) target = $region64
        $region63: #{tpu_custom_call.1} parent=55 // pred_region
          %430 = dma.done [#allocation6], 256
        $region64: #{tpu_custom_call.1} parent=55 // pred_fallthru
          _
        // Predicated region
        $region65: #{tpu_custom_call.1} parent=55 // pred_check
          %p431 = pneg %p153
        $region66: #{tpu_custom_call.1} parent=55 // pred_check_branch
          %433 = sbr.rel (%p431) target = $region68
        $region67: #{tpu_custom_call.1} parent=55 // pred_region
          %434 = dma.done [#allocation6], 16
        $region68: #{tpu_custom_call.1} parent=55 // pred_fallthru
          _
        // Predicated region
        $region69: #{tpu_custom_call.1} parent=55 // pred_check
          %p435 = pneg %p216
        $region70: #{tpu_custom_call.1} parent=55 // pred_check_branch
          %437 = sbr.rel (%p435) target = $region72
        $region71: #{tpu_custom_call.1} parent=55 // pred_region
          %438 = dma.done [#allocation9], 256
        $region72: #{tpu_custom_call.1} parent=55 // pred_fallthru
          _
        %s439 = sand.u32 %s56, 1
        %s440 = scalar_lea.sflag [#allocation3], %s439
        %s441 = sand.u32 %s56, 1
        %s442 = smul.addr %s441, 8
        %s443 = scalar_lea.vmem [#allocation2], %s442
        %p444 = pneg %p69
        %p445 = pneg %p66
        %p446 = pneg %p90
        %p447 = pneg %p87
        %p448 = pneg %p111
        %p449 = pneg %p108
        %p450 = pneg %p132
        %p451 = pneg %p129
        %p452 = pneg %p153
        %p453 = pneg %p150
        %p454 = pneg %p174
        %p455 = pneg %p171
        %p456 = pneg %p195
        %p457 = pneg %p192
        %p458 = pneg %p216
        %p459 = pneg %p213
        %p460 = pneg %p237
        %p461 = pneg %p234
        %p462 = pneg %p265
        %p463 = pneg %p262
        %s464 = sand.u32 %s252, 1
        %s465 = scalar_lea.sflag [#allocation4], %s464
        %s466 = sand.u32 %s252, 1
        %s467 = smul.addr %s466, 4
        %s468 = scalar_lea.vmem [#allocation10], %s467
        %p469 = pneg %p293
        %p470 = pneg %p290
        %s471 = sand.u32 %s34, 1
        %s472 = scalar_lea.sflag [#allocation12], %s471
        %s473 = sand.u32 %s280, 1
        %s474 = smul.addr %s473, 4
        %s475 = scalar_lea.vmem [#allocation11], %s474
        %p476 = pneg %p321
        %p477 = pneg %p318
        %s478 = sand.u32 %s34, 1
        %s479 = scalar_lea.sflag [#allocation12], %s478
        %s480 = sand.u32 %s308, 1
        %s481 = smul.addr %s480, 4
        %s482 = scalar_lea.vmem [#allocation13], %s481
        %v484 = vld [vmem:[%s422] sm:$0xff]
        %v485 = vld [vmem:[%s1] sm:$0x1]
        %v486 = vld [vmem:[%s2] sm:$0x1]
        %vm487 = vcmask 261120
        %v488 = vsel %vm487, %v484, 0.0
        %489 = vadd.xlane.f32.xlu0 %v488
        %v490 = vpop.xlane.xlu0 %489
        %v491 = vrcp.pop 32.0
        %v492 = vmul.f32 %v490, %v491
        %v493 = vsub.f32 %v484, %v492
        %v494 = vmul.f32 %v493, %v493
        %v495 = vsel %vm487, %v494, 0.0
        %496 = vadd.xlane.f32.xlu0 %v495
        %v497 = vpop.xlane.xlu0 %496
        %v498 = vmul.f32 %v497, %v491
        %v499 = vadd.f32 %v498, 1e-05
        %v500 = vrsqrt.pop %v499
        %v501 = vmul.f32 %v493, %v500
        %v503 = vlaneseq
        %v504 = vshrl.u32 %v503, 7
        %v505 = vsub.s32 0, %v504
        %v506 = vrot.slane %v485, %v505
        %v508 = vmul.f32 %v501, %v506
        %v510 = vlaneseq
        %v511 = vshrl.u32 %v510, 7
        %v512 = vsub.s32 0, %v511
        %v513 = vrot.slane %v486, %v512
        %v515 = vadd.f32 %v508, %v513
        %v516 = vpack.c.bf16 %v515, %v515
        %v517 = vld [vmem:[#allocation5] sm:$0xf]
        %v518 = vld [vmem:[#allocation5 + $0x4] sm:$0xf]
        %v519 = vld [vmem:[#allocation5 + $0x8] sm:$0xf]
        %v520 = vld [vmem:[#allocation5 + $0xc] sm:$0xf]
        %v521 = vld [vmem:[#allocation7] sm:$0x1]
        %v523 = vlaneseq
        %v524 = vshrl.u32 %v523, 7
        %v525 = vsub.s32 0, %v524
        %v526 = vrot.slane %v521, %v525
        %v532 = vunpack.c.l.b16 %v517
        %v533 = vunpack.c.l.b16 %v518
        %v534 = vunpack.c.l.b16 %v519
        %v535 = vunpack.c.l.b16 %v520
        %v536 = vpack.c.b16 %v533, %v532
        %v537 = vpack.c.b16 %v535, %v534
        %v541 = vsel %vm487, %v516, 0
        %543 = vmatprep.subr.bf16.mxu0 0
        %544 = vmatpush1.bf16.msra.mxu0 %v536
        %545 = vmatprep.subr.bf16.mxu0 0
        %546 = vmatpush1.bf16.msra.mxu0 %v537
        %547 = vmatprep.subr.bf16.mxu0 0
        %548 = vmatpush1.bf16.msra.mxu0 0
        %549 = vmatprep.subr.bf16.mxu0 0
        %550 = vmatpush1.bf16.msra.mxu0 0
        %551 = vmatprep.subr.bf16.mxu0 0
        %552 = vmatpush1.bf16.msra.mxu0 0
        %553 = vmatprep.subr.bf16.mxu0 0
        %554 = vmatpush1.bf16.msra.mxu0 0
        %555 = vmatprep.subr.bf16.mxu0 0
        %556 = vmatpush1.bf16.msra.mxu0 0
        %557 = vmatprep.subr.bf16.mxu0 0
        %558 = vmatpush1.bf16.msra.mxu0 0
        %559 = vmatprep.subr.bf16.mxu0 0
        %560 = vmatpush1.bf16.msra.mxu0 0
        %561 = vmatprep.subr.bf16.mxu0 0
        %562 = vmatpush1.bf16.msra.mxu0 0
        %563 = vmatprep.subr.bf16.mxu0 0
        %564 = vmatpush1.bf16.msra.mxu0 0
        %565 = vmatprep.subr.bf16.mxu0 0
        %566 = vmatpush1.bf16.msra.mxu0 0
        %567 = vmatprep.subr.bf16.mxu0 0
        %568 = vmatpush1.bf16.msra.mxu0 0
        %569 = vmatprep.subr.bf16.mxu0 0
        %570 = vmatpush1.bf16.msra.mxu0 0
        %571 = vmatprep.subr.bf16.mxu0 0
        %572 = vmatpush1.bf16.msra.mxu0 0
        %573 = vmatprep.subr.bf16.mxu0 0
        %574 = vmatpush1.bf16.msra.mxu0 0
        %575 = vmatprep.mubr.bf16.mxu0 0
        %576 = vmatmul.mubr.bf16.gmra.mrb[0].mxu0 %v541
        %v577 = vpop.f32.mrb[0].mxu0
        %v578 = vadd.f32 %v526, %v577
        %v579 = vpop.f32.mrb[0].mxu0
        %v580 = vpop.f32.mrb[0].mxu0
        %v581 = vpop.f32.mrb[0].mxu0
        %582 = vdwg.mxu0
        %v583 = vpack.c.bf16 %v578, %v578
        %vm584 = vcmask 257024
        %585 = vst.msk [vmem:[%s468] sm:$0xf] %vm584, %v583
        %v586 = vld [vmem:[%s5] sm:$0xf]
        %v587 = vld [vmem:[%s5 + $0x4] sm:$0xf]
        %v588 = vld [vmem:[%s5 + $0x8] sm:$0xf]
        %v589 = vld [vmem:[%s5 + $0xc] sm:$0xf]
        %v590 = vld [vmem:[%s6] sm:$0x1]
        %v592 = vlaneseq
        %v593 = vshrl.u32 %v592, 7
        %v594 = vsub.s32 0, %v593
        %v595 = vrot.slane %v590, %v594
        %v601 = vunpack.c.l.b16 %v586
        %v602 = vunpack.c.l.b16 %v587
        %v603 = vunpack.c.l.b16 %v588
        %v604 = vunpack.c.l.b16 %v589
        %v605 = vpack.c.b16 %v602, %v601
        %v606 = vpack.c.b16 %v604, %v603
        %609 = vmatprep.subr.bf16.mxu0 0
        %610 = vmatpush1.bf16.msra.mxu0 %v605
        %611 = vmatprep.subr.bf16.mxu0 0
        %612 = vmatpush1.bf16.msra.mxu0 %v606
        %613 = vmatprep.subr.bf16.mxu0 0
        %614 = vmatpush1.bf16.msra.mxu0 0
        %615 = vmatprep.subr.bf16.mxu0 0
        %616 = vmatpush1.bf16.msra.mxu0 0
        %617 = vmatprep.subr.bf16.mxu0 0
        %618 = vmatpush1.bf16.msra.mxu0 0
        %619 = vmatprep.subr.bf16.mxu0 0
        %620 = vmatpush1.bf16.msra.mxu0 0
        %621 = vmatprep.subr.bf16.mxu0 0
        %622 = vmatpush1.bf16.msra.mxu0 0
        %623 = vmatprep.subr.bf16.mxu0 0
        %624 = vmatpush1.bf16.msra.mxu0 0
        %625 = vmatprep.subr.bf16.mxu0 0
        %626 = vmatpush1.bf16.msra.mxu0 0
        %627 = vmatprep.subr.bf16.mxu0 0
        %628 = vmatpush1.bf16.msra.mxu0 0
        %629 = vmatprep.subr.bf16.mxu0 0
        %630 = vmatpush1.bf16.msra.mxu0 0
        %631 = vmatprep.subr.bf16.mxu0 0
        %632 = vmatpush1.bf16.msra.mxu0 0
        %633 = vmatprep.subr.bf16.mxu0 0
        %634 = vmatpush1.bf16.msra.mxu0 0
        %635 = vmatprep.subr.bf16.mxu0 0
        %636 = vmatpush1.bf16.msra.mxu0 0
        %637 = vmatprep.subr.bf16.mxu0 0
        %638 = vmatpush1.bf16.msra.mxu0 0
        %639 = vmatprep.subr.bf16.mxu0 0
        %640 = vmatpush1.bf16.msra.mxu0 0
        %641 = vmatprep.mubr.bf16.mxu0 0
        %642 = vmatmul.mubr.bf16.gmra.mrb[0].mxu0 %v541
        %v643 = vpop.f32.mrb[0].mxu0
        %v644 = vadd.f32 %v595, %v643
        %v645 = vpop.f32.mrb[0].mxu0
        %v646 = vpop.f32.mrb[0].mxu0
        %v647 = vpop.f32.mrb[0].mxu0
        %648 = vdwg.mxu0
        %v649 = vpack.c.bf16 %v644, %v644
        %650 = vst.msk [vmem:[%s475] sm:$0xf] %vm584, %v649
        %v651 = vld [vmem:[#allocation8] sm:$0xf]
        %v652 = vld [vmem:[#allocation8 + $0x4] sm:$0xf]
        %v653 = vld [vmem:[#allocation8 + $0x8] sm:$0xf]
        %v654 = vld [vmem:[#allocation8 + $0xc] sm:$0xf]
        %v655 = vld [vmem:[%s8] sm:$0x1]
        %v657 = vlaneseq
        %v658 = vshrl.u32 %v657, 7
        %v659 = vsub.s32 0, %v658
        %v660 = vrot.slane %v655, %v659
        %v666 = vunpack.c.l.b16 %v651
        %v667 = vunpack.c.l.b16 %v652
        %v668 = vunpack.c.l.b16 %v653
        %v669 = vunpack.c.l.b16 %v654
        %v670 = vpack.c.b16 %v667, %v666
        %v671 = vpack.c.b16 %v669, %v668
        %674 = vmatprep.subr.bf16.mxu0 0
        %675 = vmatpush1.bf16.msra.mxu0 %v670
        %676 = vmatprep.subr.bf16.mxu0 0
        %677 = vmatpush1.bf16.msra.mxu0 %v671
        %678 = vmatprep.subr.bf16.mxu0 0
        %679 = vmatpush1.bf16.msra.mxu0 0
        %680 = vmatprep.subr.bf16.mxu0 0
        %681 = vmatpush1.bf16.msra.mxu0 0
        %682 = vmatprep.subr.bf16.mxu0 0
        %683 = vmatpush1.bf16.msra.mxu0 0
        %684 = vmatprep.subr.bf16.mxu0 0
        %685 = vmatpush1.bf16.msra.mxu0 0
        %686 = vmatprep.subr.bf16.mxu0 0
        %687 = vmatpush1.bf16.msra.mxu0 0
        %688 = vmatprep.subr.bf16.mxu0 0
        %689 = vmatpush1.bf16.msra.mxu0 0
        %690 = vmatprep.subr.bf16.mxu0 0
        %691 = vmatpush1.bf16.msra.mxu0 0
        %692 = vmatprep.subr.bf16.mxu0 0
        %693 = vmatpush1.bf16.msra.mxu0 0
        %694 = vmatprep.subr.bf16.mxu0 0
        %695 = vmatpush1.bf16.msra.mxu0 0
        %696 = vmatprep.subr.bf16.mxu0 0
        %697 = vmatpush1.bf16.msra.mxu0 0
        %698 = vmatprep.subr.bf16.mxu0 0
        %699 = vmatpush1.bf16.msra.mxu0 0
        %700 = vmatprep.subr.bf16.mxu0 0
        %701 = vmatpush1.bf16.msra.mxu0 0
        %702 = vmatprep.subr.bf16.mxu0 0
        %703 = vmatpush1.bf16.msra.mxu0 0
        %704 = vmatprep.subr.bf16.mxu0 0
        %705 = vmatpush1.bf16.msra.mxu0 0
        %706 = vmatprep.mubr.bf16.mxu0 0
        %707 = vmatmul.mubr.bf16.gmra.mrb[0].mxu0 %v541
        %v708 = vpop.f32.mrb[0].mxu0
        %v709 = vadd.f32 %v660, %v708
        %v710 = vpop.f32.mrb[0].mxu0
        %v711 = vpop.f32.mrb[0].mxu0
        %v712 = vpop.f32.mrb[0].mxu0
        %713 = vdwg.mxu0
        %v714 = vpack.c.bf16 %v709, %v709
        %715 = vst.msk [vmem:[%s482] sm:$0xf] %vm584, %v714
        %s716 = sand.u32 %s252, 1
        %s717 = scalar_lea.sflag [#allocation4], %s716
        %s718 = sand.u32 %s252, 1
        %s719 = smul.addr %s718, 4
        %s720 = scalar_lea.vmem [#allocation10], %s719
        %s721 = sand.u32 %s34, 1
        %s722 = scalar_lea.sflag [#allocation12], %s721
        %s723 = sand.u32 %s280, 1
        %s724 = smul.addr %s723, 4
        %s725 = scalar_lea.vmem [#allocation11], %s724
        %s726 = sand.u32 %s34, 1
        %s727 = scalar_lea.sflag [#allocation12], %s726
        %s728 = sand.u32 %s308, 1
        %s729 = smul.addr %s728, 4
        %s730 = scalar_lea.vmem [#allocation13], %s729
        // Predicated region
        $region73: #{tpu_custom_call.1} parent=55 // pred_check
          %p731 = pneg %p262
        $region74: #{tpu_custom_call.1} parent=55 // pred_check_branch
          %733 = sbr.rel (%p731) target = $region76
        $region75: #{tpu_custom_call.1} parent=55 // pred_region
          %s735 = ssub.s32 64, 64
          %736 = vsyncadd %s717, %s735
          %s737 = sadd.s32 %s39, %s38
          %s738 = smul.addr %s737, 64
          %s739 = scalar_lea.hbm %s9, %s738
          %s741 = sshll.u32 %s720, 4
          %s742 = int_to_ptr.vmem [resolvable:$true] %s741
          %744 = dma.vmem_to_hbm [thread:$0]  %s742, 64, %s739, %s717
        $region76: #{tpu_custom_call.1} parent=55 // pred_fallthru
          _
        // Predicated region
        $region77: #{tpu_custom_call.1} parent=55 // pred_check
          %p745 = pneg %p290
        $region78: #{tpu_custom_call.1} parent=55 // pred_check_branch
          %747 = sbr.rel (%p745) target = $region80
        $region79: #{tpu_custom_call.1} parent=55 // pred_region
          %s749 = ssub.s32 64, 64
          %750 = vsyncadd %s722, %s749
          %s751 = sadd.s32 %s39, %s38
          %s752 = smul.addr %s751, 64
          %s753 = scalar_lea.hbm %s10, %s752
          %s755 = sshll.u32 %s725, 4
          %s756 = int_to_ptr.vmem [resolvable:$true] %s755
          %758 = dma.vmem_to_hbm [thread:$0]  %s756, 64, %s753, %s722
        $region80: #{tpu_custom_call.1} parent=55 // pred_fallthru
          _
        // Predicated region
        $region81: #{tpu_custom_call.1} parent=55 // pred_check
          %p759 = pneg %p318
        $region82: #{tpu_custom_call.1} parent=55 // pred_check_branch
          %761 = sbr.rel (%p759) target = $region84
        $region83: #{tpu_custom_call.1} parent=55 // pred_region
          %s763 = ssub.s32 64, 64
          %764 = vsyncadd %s727, %s763
          %s765 = sadd.s32 %s39, %s38
          %s766 = smul.addr %s765, 64
          %s767 = scalar_lea.hbm %s11, %s766
          %s769 = sshll.u32 %s730, 4
          %s770 = int_to_ptr.vmem [resolvable:$true] %s769
          %772 = dma.vmem_to_hbm [thread:$0]  %s770, 64, %s767, %s727
        $region84: #{tpu_custom_call.1} parent=55 // pred_fallthru
          _
      $region56: #{tpu_custom_call.1} parent=5 // pred_fallthru
        _
      %p773 = scmp.le.s32.totalorder 2, %s29
      // Predicated region
      $region85: #{tpu_custom_call.1} parent=5 // pred_check
        %p774 = pneg %p773
      $region86: #{tpu_custom_call.1} parent=5 // pred_check_branch
        %776 = sbr.rel (%p774) target = $region88
      $region87: #{tpu_custom_call.1} parent=5 // pred_region
        %s777 = ssub.s32 %s29, 2
        // Predicated region
        $region89: #{tpu_custom_call.1} parent=87 // pred_check
          %p778 = pneg %p268
        $region90: #{tpu_custom_call.1} parent=87 // pred_check_branch
          %780 = sbr.rel (%p778) target = $region92
        $region91: #{tpu_custom_call.1} parent=87 // pred_region
          %s781 = sand.u32 %s253, 1
          %s782 = scalar_lea.sflag [#allocation4], %s781
          %s783 = sand.u32 %s253, 1
          %s784 = smul.addr %s783, 4
          %s785 = scalar_lea.vmem [#allocation10], %s784
          %786 = dma.done %s782, 64
        $region92: #{tpu_custom_call.1} parent=87 // pred_fallthru
          _
        // Predicated region
        $region93: #{tpu_custom_call.1} parent=87 // pred_check
          %p787 = pneg %p296
        $region94: #{tpu_custom_call.1} parent=87 // pred_check_branch
          %789 = sbr.rel (%p787) target = $region96
        $region95: #{tpu_custom_call.1} parent=87 // pred_region
          %s790 = sand.u32 %s35, 1
          %s791 = scalar_lea.sflag [#allocation12], %s790
          %s792 = sand.u32 %s281, 1
          %s793 = smul.addr %s792, 4
          %s794 = scalar_lea.vmem [#allocation11], %s793
          %795 = dma.done %s791, 64
        $region96: #{tpu_custom_call.1} parent=87 // pred_fallthru
          _
        // Predicated region
        $region97: #{tpu_custom_call.1} parent=87 // pred_check
          %p796 = pneg %p324
        $region98: #{tpu_custom_call.1} parent=87 // pred_check_branch
          %798 = sbr.rel (%p796) target = $region100
        $region99: #{tpu_custom_call.1} parent=87 // pred_region
          %s799 = sand.u32 %s35, 1
          %s800 = scalar_lea.sflag [#allocation12], %s799
          %s801 = sand.u32 %s309, 1
          %s802 = smul.addr %s801, 4
          %s803 = scalar_lea.vmem [#allocation13], %s802
          %804 = dma.done %s800, 64
        $region100: #{tpu_custom_call.1} parent=87 // pred_fallthru
          _
      $region88: #{tpu_custom_call.1} parent=5 // pred_fallthru
        _
    $region6: #{tpu_custom_call.1} parent=1 // loop_footer
      %s33 = sadd.s32 1, %s29
    $region7: #{tpu_custom_call.1} parent=1 // loop_footer_branch
      %28 = sbr.rel target = $region3
    $region8: #{tpu_custom_call.1} parent=1 // loop_exit
      _
    %805 = vsyncpa [#allocation3], 1
    %s806 = scalar_lea.sflag [#allocation3], 1
    %807 = vsyncpa %s806, 1
    %808 = vsyncpa [#allocation6], 1
    %809 = vsyncpa [#allocation9], 1
    %810 = vsyncpa [#allocation4], 1
    %s811 = scalar_lea.sflag [#allocation4], 1
    %812 = vsyncpa %s811, 1
    %813 = vsyncpa [#allocation12], 1
    %s814 = scalar_lea.sflag [#allocation12], 1
    %815 = vsyncpa %s814, 1

</llo_original>
